<compile_context>
chip_gen: v7x
topology: tpu7x:2x2x1
jax: 0.10.0
libtpu: 0.0.40
codegen_flags: <defaults>
</compile_context>

<pallas_src>
import functools

import jax
import jax.numpy as jnp
from jax.experimental import pallas as pl
from jax.experimental.pallas import tpu as pltpu


_VMEM_LIMIT = 48 * 1024 * 1024  # explicit scoped-VMEM cap (fits v7x's 64 MiB)


# ---------------------------------------------------------------------------
# small helpers
# ---------------------------------------------------------------------------
def _round_up(n, m):
    return ((n + m - 1) // m) * m


def _pad_last(a, target):
    pad = target - a.shape[-1]
    if pad == 0:
        return a
    cfg = [(0, 0)] * (a.ndim - 1) + [(0, pad)]
    return jnp.pad(a, cfg)


def _pad2(a, rows, cols):
    out = jnp.zeros((rows, cols), a.dtype)
    return out.at[: a.shape[0], : a.shape[1]].set(a)


def _pick_tile_hw(hw, cin_p, cout_p, budget_bytes=24 * 1024 * 1024):
    """Largest divisor of hw that is a multiple of 8 and fits the VMEM budget."""
    cap = budget_bytes // (8 * (cin_p + cout_p))       # rows (2x double-buffered)
    cap = max(8, min(hw, cap, 2048))
    t = (cap // 8) * 8
    while t >= 8:
        if hw % t == 0:
            return t
        t -= 8
    return hw                                           # fall back to full extent


# ---------------------------------------------------------------------------
# kernel 1/3: (optional GN-apply + ReLU) -> 1x1 conv matmul -> GN stats
# ---------------------------------------------------------------------------
def _conv1x1_gn_stats_kernel(*refs, apply_norm):
    if apply_norm:
        x_ref, scale_ref, shift_ref, w_ref, y_ref, s_ref, q_ref = refs
        x = jnp.maximum(x_ref[...] * scale_ref[...] + shift_ref[...], 0.0)
    else:
        x_ref, w_ref, y_ref, s_ref, q_ref = refs
        x = x_ref[...]

    y = jnp.dot(x, w_ref[...], preferred_element_type=jnp.float32)  # (TH, Cout_p)
    y_ref[...] = y

    @pl.when(pl.program_id(1) == 0)
    def _init():
        s_ref[...] = jnp.zeros_like(s_ref)
        q_ref[...] = jnp.zeros_like(q_ref)

    s_ref[...] += jnp.sum(y, axis=0, keepdims=True)
    q_ref[...] += jnp.sum(y * y, axis=0, keepdims=True)


def _conv1x1_gn_stats(x, w, scale=None, shift=None, *, tile_hw):
    n, hw, cin_p = x.shape
    cout_p = w.shape[1]
    apply_norm = scale is not None
    nh = hw // tile_hw

    kernel = functools.partial(_conv1x1_gn_stats_kernel, apply_norm=apply_norm)

    in_specs = [pl.BlockSpec((None, tile_hw, cin_p), lambda i, h: (i, h, 0))]
    args = [x]
    if apply_norm:
        in_specs += [
            pl.BlockSpec((None, 1, cin_p), lambda i, h: (i, 0, 0)),
            pl.BlockSpec((None, 1, cin_p), lambda i, h: (i, 0, 0)),
        ]
        args += [scale, shift]
    in_specs += [pl.BlockSpec((cin_p, cout_p), lambda i, h: (0, 0))]
    args += [w]

    out_shape = (
        jax.ShapeDtypeStruct((n, hw, cout_p), jnp.float32),
        jax.ShapeDtypeStruct((n, 1, cout_p), jnp.float32),
        jax.ShapeDtypeStruct((n, 1, cout_p), jnp.float32),
    )
    out_specs = (
        pl.BlockSpec((None, tile_hw, cout_p), lambda i, h: (i, h, 0)),
        pl.BlockSpec((None, 1, cout_p), lambda i, h: (i, 0, 0)),   # resident acc
        pl.BlockSpec((None, 1, cout_p), lambda i, h: (i, 0, 0)),   # resident acc
    )

    return pl.pallas_call(
        kernel,
        out_shape=out_shape,
        grid_spec=pltpu.PrefetchScalarGridSpec(
            num_scalar_prefetch=0,
            grid=(n, nh),
            in_specs=in_specs,
            out_specs=out_specs,
        ),
        compiler_params=pltpu.CompilerParams(
            dimension_semantics=("parallel", "arbitrary"),
            vmem_limit_bytes=_VMEM_LIMIT,
        ),
    )(*args)


# ---------------------------------------------------------------------------
# kernel 2: GN1-apply + ReLU -> 3x3 conv (9 shifted matmuls) -> GN2 stats
# ---------------------------------------------------------------------------
def _conv3x3_gn_stats_kernel(x_ref, scale_ref, shift_ref, w_ref,
                             y_ref, s_ref, q_ref, *, H, W):
    hw = H * W
    cout = w_ref.shape[-1]

    # fused GroupNorm(1) apply + ReLU on the input
    x = jnp.maximum(x_ref[...] * scale_ref[...] + shift_ref[...], 0.0)  # (HW, Cin_p)

    pos = jax.lax.broadcasted_iota(jnp.int32, (hw, 1), 0)
    hh = pos // W
    ww = pos % W

    acc = jnp.zeros((hw, cout), jnp.float32)
    for dy in (-1, 0, 1):
        for dx in (-1, 0, 1):
            off = dy * W + dx
            if dy == 0 and dx == 0:
                xm = x
            else:
                xs = pltpu.roll(x, (-off) % hw, axis=0)
                valid = (((hh + dy) >= 0) & ((hh + dy) < H) &
                         ((ww + dx) >= 0) & ((ww + dx) < W))
                xm = jnp.where(valid, xs, 0.0)
            k = (dy + 1) * 3 + (dx + 1)
            acc = acc + jnp.dot(xm, w_ref[k], preferred_element_type=jnp.float32)

    y_ref[...] = acc
    s_ref[...] = jnp.sum(acc, axis=0, keepdims=True)
    q_ref[...] = jnp.sum(acc * acc, axis=0, keepdims=True)


def _conv3x3_gn_stats(x, scale, shift, w, *, H, W):
    n, hw, cin_p = x.shape
    cout_p = w.shape[-1]
    kernel = functools.partial(_conv3x3_gn_stats_kernel, H=H, W=W)

    return pl.pallas_call(
        kernel,
        out_shape=(
            jax.ShapeDtypeStruct((n, hw, cout_p), jnp.float32),
            jax.ShapeDtypeStruct((n, 1, cout_p), jnp.float32),
            jax.ShapeDtypeStruct((n, 1, cout_p), jnp.float32),
        ),
        grid_spec=pltpu.PrefetchScalarGridSpec(
            num_scalar_prefetch=0,
            grid=(n,),
            in_specs=[
                pl.BlockSpec((None, hw, cin_p), lambda i: (i, 0, 0)),
                pl.BlockSpec((None, 1, cin_p), lambda i: (i, 0, 0)),
                pl.BlockSpec((None, 1, cin_p), lambda i: (i, 0, 0)),
                pl.BlockSpec((9, cin_p, cout_p), lambda i: (0, 0, 0)),
            ],
            out_specs=(
                pl.BlockSpec((None, hw, cout_p), lambda i: (i, 0, 0)),
                pl.BlockSpec((None, 1, cout_p), lambda i: (i, 0, 0)),
                pl.BlockSpec((None, 1, cout_p), lambda i: (i, 0, 0)),
            ),
        ),
        compiler_params=pltpu.CompilerParams(
            dimension_semantics=("parallel",),
            vmem_limit_bytes=_VMEM_LIMIT,
        ),
    )(x, scale, shift, w)


# ---------------------------------------------------------------------------
# kernel 4: GN3-apply + residual add + ReLU (elementwise epilogue)
# ---------------------------------------------------------------------------
def _gn_residual_relu_kernel(y_ref, scale_ref, shift_ref, id_ref, o_ref):
    o_ref[...] = jnp.maximum(
        y_ref[...] * scale_ref[...] + shift_ref[...] + id_ref[...], 0.0)


def _gn_residual_relu(y, scale, shift, ident, *, tile_hw):
    n, hw, cp = y.shape
    nh = hw // tile_hw
    return pl.pallas_call(
        _gn_residual_relu_kernel,
        out_shape=jax.ShapeDtypeStruct((n, hw, cp), jnp.float32),
        grid_spec=pltpu.PrefetchScalarGridSpec(
            num_scalar_prefetch=0,
            grid=(n, nh),
            in_specs=[
                pl.BlockSpec((None, tile_hw, cp), lambda i, h: (i, h, 0)),
                pl.BlockSpec((None, 1, cp), lambda i, h: (i, 0, 0)),
                pl.BlockSpec((None, 1, cp), lambda i, h: (i, 0, 0)),
                pl.BlockSpec((None, tile_hw, cp), lambda i, h: (i, h, 0)),
            ],
            out_specs=pl.BlockSpec((None, tile_hw, cp), lambda i, h: (i, h, 0)),
        ),
        compiler_params=pltpu.CompilerParams(
            dimension_semantics=("parallel", "parallel"),
            vmem_limit_bytes=_VMEM_LIMIT,
        ),
    )(y, scale, shift, ident)


# ---------------------------------------------------------------------------
# GroupNorm scale/shift folding (tiny (N, C) math, done in the wrapper)
# ---------------------------------------------------------------------------
def _gn_fold(s, q, gamma, beta, c_real, num_groups, hw, eps):
    n = s.shape[0]
    cp = s.shape[-1]
    s = s[:, 0, :c_real]
    q = q[:, 0, :c_real]
    gs = c_real // num_groups
    cnt = float(hw * gs)

    gsum = s.reshape(n, num_groups, gs).sum(axis=-1)
    gsq = q.reshape(n, num_groups, gs).sum(axis=-1)
    mean = gsum / cnt
    var = gsq / cnt - mean * mean
    inv = jax.lax.rsqrt(var + eps)

    mean_c = jnp.repeat(mean, gs, axis=1)                 # (N, C)
    inv_c = jnp.repeat(inv, gs, axis=1)                   # (N, C)
    gamma = gamma.astype(jnp.float32)[None, :]
    beta = beta.astype(jnp.float32)[None, :]
    scale = gamma * inv_c
    shift = beta - mean_c * scale

    scale = _pad_last(scale, cp).reshape(n, 1, cp)
    shift = _pad_last(shift, cp).reshape(n, 1, cp)
    return scale, shift


# ---------------------------------------------------------------------------
# public wrapper: full Bottleneck forward (NCHW in, NCHW out)
# ---------------------------------------------------------------------------
def bottleneck_forward(x, params, *, num_groups=32, eps=1e-5,
                       stride=1, groups=1, dilation=1, downsample=None):
    assert stride == 1 and groups == 1 and dilation == 1 and downsample is None, (
        "only the Bottleneck defaults (stride=1, groups=1, dilation=1, "
        "downsample=None) are implemented")

    x = x.astype(jnp.float32)
    n, cin, h, w = x.shape
    hw = h * w
    width = params["conv1_w"].shape[0]
    c4 = params["conv3_w"].shape[0]
    assert cin == c4, "identity residual needs inplanes == planes*expansion"
    assert width % num_groups == 0 and c4 % num_groups == 0

    cin_p = _round_up(cin, 128)
    cw_p = _round_up(width, 128)
    c4_p = _round_up(c4, 128)

    # NCHW -> (N, HW, C) with lane-dense channel padding
    x_l = jnp.transpose(x, (0, 2, 3, 1)).reshape(n, hw, cin)
    x_p = _pad_last(x_l, cin_p)

    # weights in (in, out) matmul layout, zero-padded
    w1 = _pad2(params["conv1_w"][:, :, 0, 0].T.astype(jnp.float32), cin_p, cw_p)
    w3 = _pad2(params["conv3_w"][:, :, 0, 0].T.astype(jnp.float32), cw_p, c4_p)
    w2_t = jnp.transpose(params["conv2_w"].astype(jnp.float32), (2, 3, 1, 0))
    w2 = jnp.zeros((9, cw_p, cw_p), jnp.float32).at[:, :width, :width].set(
        w2_t.reshape(9, width, width))

    # --- stage 1: conv1 (1x1) + GN1 stats ---
    tile1 = _pick_tile_hw(hw, cin_p, cw_p)
    y1, s1, q1 = _conv1x1_gn_stats(x_p, w1, tile_hw=tile1)
    sc1, sh1 = _gn_fold(s1, q1, params["gn1_w"], params["gn1_b"],
                        width, num_groups, hw, eps)

    # --- stage 2: GN1 apply + ReLU + conv2 (3x3) + GN2 stats ---
    y2, s2, q2 = _conv3x3_gn_stats(y1, sc1, sh1, w2, H=h, W=w)
    sc2, sh2 = _gn_fold(s2, q2, params["gn2_w"], params["gn2_b"],
                        width, num_groups, hw, eps)

    # --- stage 3: GN2 apply + ReLU + conv3 (1x1) + GN3 stats ---
    tile3 = _pick_tile_hw(hw, cw_p, c4_p)
    y3, s3, q3 = _conv1x1_gn_stats(y2, w3, sc2, sh2, tile_hw=tile3)
    sc3, sh3 = _gn_fold(s3, q3, params["gn3_w"], params["gn3_b"],
                        c4, num_groups, hw, eps)

    # --- stage 4: GN3 apply + residual add + ReLU ---
    tile4 = _pick_tile_hw(hw, 2 * c4_p, c4_p)
    assert cin_p == c4_p
    out_p = _gn_residual_relu(y3, sc3, sh3, x_p, tile_hw=tile4)

    out = out_p[:, :, :c4].reshape(n, h, w, c4)
    return jnp.transpose(out, (0, 3, 1, 2))               # NCHW


# ---------------------------------------------------------------------------
# pure-JAX reference mirroring the PyTorch Bottleneck forward
# ---------------------------------------------------------------------------
def _group_norm_ref(y, gamma, beta, num_groups, eps):
    n, c, h, w = y.shape
    yg = y.reshape(n, num_groups, c // num_groups, h, w)
    mu = yg.mean(axis=(2, 3, 4), keepdims=True)
    var = ((yg - mu) ** 2).mean(axis=(2, 3, 4), keepdims=True)
    yn = ((yg - mu) * jax.lax.rsqrt(var + eps)).reshape(n, c, h, w)
    return yn * gamma.reshape(1, -1, 1, 1) + beta.reshape(1, -1, 1, 1)


def _reference(x, params, num_groups=32, eps=1e-5):
    hi = jax.lax.Precision.HIGHEST
    w1 = params["conv1_w"][:, :, 0, 0]
    y = jnp.einsum("nchw,oc->nohw", x, w1, precision=hi)
    y = jax.nn.relu(_group_norm_ref(y, params["gn1_w"], params["gn1_b"], num_groups, eps))
    y = jax.lax.conv_general_dilated(
        y, params["conv2_w"], window_strides=(1, 1), padding=((1, 1), (1, 1)),
        dimension_numbers=("NCHW", "OIHW", "NCHW"), precision=hi)
    y = jax.nn.relu(_group_norm_ref(y, params["gn2_w"], params["gn2_b"], num_groups, eps))
    w3 = params["conv3_w"][:, :, 0, 0]
    y = jnp.einsum("nchw,oc->nohw", y, w3, precision=hi)
    y = _group_norm_ref(y, params["gn3_w"], params["gn3_b"], num_groups, eps)
    return jax.nn.relu(y + x)


if __name__ == "__main__":
    # Small shapes consistent with the module: GroupNorm(32, width) forces
    # width % 32 == 0, and downsample=None forces inplanes == planes * 4.
    N, planes, H, W = 2, 32, 16, 16
    width = planes                   # base_width=64, groups=1
    inplanes = planes * 4            # 128
    C4 = planes * 4                  # 128

    key = jax.random.PRNGKey(0)
    ks = jax.random.split(key, 12)

    x = jax.random.normal(ks[0], (N, inplanes, H, W), dtype=jnp.float32)
    params = {
        "conv1_w": 0.05 * jax.random.normal(ks[1], (width, inplanes, 1, 1), jnp.float32),
        "gn1_w": 1.0 + 0.1 * jax.random.normal(ks[2], (width,), jnp.float32),
        "gn1_b": 0.1 * jax.random.normal(ks[3], (width,), jnp.float32),
        "conv2_w": 0.05 * jax.random.normal(ks[4], (width, width, 3, 3), jnp.float32),
        "gn2_w": 1.0 + 0.1 * jax.random.normal(ks[5], (width,), jnp.float32),
        "gn2_b": 0.1 * jax.random.normal(ks[6], (width,), jnp.float32),
        "conv3_w": 0.05 * jax.random.normal(ks[7], (C4, width, 1, 1), jnp.float32),
        "gn3_w": 1.0 + 0.1 * jax.random.normal(ks[8], (C4,), jnp.float32),
        "gn3_b": 0.1 * jax.random.normal(ks[9], (C4,), jnp.float32),
    }

    out = jax.block_until_ready(bottleneck_forward(x, params))
    ref = jax.block_until_ready(_reference(x, params))

    assert out.shape == (N, C4, H, W)
    err = float(jnp.max(jnp.abs(out - ref)))
    assert err < 2e-2, f"mismatch vs pure-JAX reference: max abs err = {err}"

    print("KERNEL_OK")
</pallas_src>

<mosaic_0001>
module attributes {stable_mosaic.version = 11 : i64} {
  func.func @_conv1x1_gn_stats_kernel(%arg0: i32, %arg1: i32, %arg2: memref<1x256x128xf32, #tpu.memory_space<vmem>>, %arg3: memref<128x128xf32, #tpu.memory_space<vmem>>, %arg4: memref<1x256x128xf32, #tpu.memory_space<vmem>>, %arg5: memref<1x1x128xf32, #tpu.memory_space<vmem>>, %arg6: memref<1x1x128xf32, #tpu.memory_space<vmem>>) attributes {dimension_semantics = [#tpu.dimension_semantics<parallel>, #tpu.dimension_semantics<arbitrary>], iteration_bounds = array<i64: 2, 1>, scalar_prefetch = 0 : i64, scratch_operands = 0 : i64, tpu.core_type = #tpu.core_type<tc>, window_params = [{transform_indices = @transform_0, window_bounds = array<i64: 1, 256, 128>}, {pipeline_mode = #tpu.pipeline_mode<synchronous>, transform_indices = @transform_1, window_bounds = array<i64: 128, 128>}, {transform_indices = @transform_2, window_bounds = array<i64: 1, 256, 128>}, {transform_indices = @transform_3, window_bounds = array<i64: 1, 1, 128>}, {transform_indices = @transform_4, window_bounds = array<i64: 1, 1, 128>}]} {
    %c0 = arith.constant 0 : index
    %c0_0 = arith.constant 0 : index
    %c0_1 = arith.constant 0 : index
    %0 = vector.load %arg2[%c0, %c0_0, %c0_1] : memref<1x256x128xf32, #tpu.memory_space<vmem>>, vector<1x256x128xf32>
    %1 = vector.shape_cast %0 : vector<1x256x128xf32> to vector<256x128xf32>
    %c0_2 = arith.constant 0 : index
    %c0_3 = arith.constant 0 : index
    %2 = vector.load %arg3[%c0_2, %c0_3] : memref<128x128xf32, #tpu.memory_space<vmem>>, vector<128x128xf32>
    %cst = arith.constant dense<0.000000e+00> : vector<256x128xf32>
    %3 = tpu.matmul %1, %2, %cst {dimension_numbers = #tpu.dot_dimension_numbers<[1], [0], [0], [1], [0, 0, 1, 1], [], []>} : vector<256x128xf32>, vector<128x128xf32>, vector<256x128xf32> -> vector<256x128xf32>
    %c0_4 = arith.constant 0 : index
    %c0_5 = arith.constant 0 : index
    %c0_6 = arith.constant 0 : index
    %4 = vector.load %arg4[%c0_4, %c0_5, %c0_6] : memref<1x256x128xf32, #tpu.memory_space<vmem>>, vector<1x256x128xf32>
    %5 = vector.shape_cast %4 : vector<1x256x128xf32> to vector<256x128xf32>
    %6 = vector.shape_cast %3 : vector<256x128xf32> to vector<1x256x128xf32>
    tpu.vector_store %arg4[%c0_4, %c0_5, %c0_6], %6 {strides = array<i32>} : memref<1x256x128xf32, #tpu.memory_space<vmem>>, vector<1x256x128xf32>,
    %c0_i32 = arith.constant 0 : i32
    %7 = arith.cmpi eq, %arg1, %c0_i32 : i32
    %8 = arith.extui %7 : i1 to i32
    %c0_i32_7 = arith.constant 0 : i32
    %9 = arith.cmpi ne, %8, %c0_i32_7 : i32
    scf.if %9 {
      %cst_22 = arith.constant 0.000000e+00 : f32
      %27 = vector.broadcast %cst_22 : f32 to vector<1x128xf32>
      %c0_23 = arith.constant 0 : index
      %c0_24 = arith.constant 0 : index
      %c0_25 = arith.constant 0 : index
      %28 = vector.load %arg5[%c0_23, %c0_24, %c0_25] : memref<1x1x128xf32, #tpu.memory_space<vmem>>, vector<1x1x128xf32>
      %29 = vector.shape_cast %28 : vector<1x1x128xf32> to vector<1x128xf32>
      %30 = vector.shape_cast %27 : vector<1x128xf32> to vector<1x1x128xf32>
      tpu.vector_store %arg5[%c0_23, %c0_24, %c0_25], %30 {strides = array<i32>} : memref<1x1x128xf32, #tpu.memory_space<vmem>>, vector<1x1x128xf32>,
      %cst_26 = arith.constant 0.000000e+00 : f32
      %31 = vector.broadcast %cst_26 : f32 to vector<1x128xf32>
      %c0_27 = arith.constant 0 : index
      %c0_28 = arith.constant 0 : index
      %c0_29 = arith.constant 0 : index
      %32 = vector.load %arg6[%c0_27, %c0_28, %c0_29] : memref<1x1x128xf32, #tpu.memory_space<vmem>>, vector<1x1x128xf32>
      %33 = vector.shape_cast %32 : vector<1x1x128xf32> to vector<1x128xf32>
      %34 = vector.shape_cast %31 : vector<1x128xf32> to vector<1x1x128xf32>
      tpu.vector_store %arg6[%c0_27, %c0_28, %c0_29], %34 {strides = array<i32>} : memref<1x1x128xf32, #tpu.memory_space<vmem>>, vector<1x1x128xf32>,
    } else {
    }
    %c0_8 = arith.constant 0 : index
    %c0_9 = arith.constant 0 : index
    %c0_10 = arith.constant 0 : index
    %10 = vector.load %arg5[%c0_8, %c0_9, %c0_10] : memref<1x1x128xf32, #tpu.memory_space<vmem>>, vector<1x1x128xf32>
    %11 = vector.shape_cast %10 : vector<1x1x128xf32> to vector<1x128xf32>
    %cst_11 = arith.constant dense<0.000000e+00> : vector<128xf32>
    %12 = vector.multi_reduction <add>, %3, %cst_11 [0] : vector<256x128xf32> to vector<128xf32>
    %13 = vector.shape_cast %12 : vector<128xf32> to vector<1x128xf32>
    %14 = arith.addf %11, %13 : vector<1x128xf32>
    %c0_12 = arith.constant 0 : index
    %c0_13 = arith.constant 0 : index
    %c0_14 = arith.constant 0 : index
    %15 = vector.load %arg5[%c0_12, %c0_13, %c0_14] : memref<1x1x128xf32, #tpu.memory_space<vmem>>, vector<1x1x128xf32>
    %16 = vector.shape_cast %15 : vector<1x1x128xf32> to vector<1x128xf32>
    %17 = vector.shape_cast %14 : vector<1x128xf32> to vector<1x1x128xf32>
    tpu.vector_store %arg5[%c0_12, %c0_13, %c0_14], %17 {strides = array<i32>} : memref<1x1x128xf32, #tpu.memory_space<vmem>>, vector<1x1x128xf32>,
    %c0_15 = arith.constant 0 : index
    %c0_16 = arith.constant 0 : index
    %c0_17 = arith.constant 0 : index
    %18 = vector.load %arg6[%c0_15, %c0_16, %c0_17] : memref<1x1x128xf32, #tpu.memory_space<vmem>>, vector<1x1x128xf32>
    %19 = vector.shape_cast %18 : vector<1x1x128xf32> to vector<1x128xf32>
    %20 = arith.mulf %3, %3 : vector<256x128xf32>
    %cst_18 = arith.constant dense<0.000000e+00> : vector<128xf32>
    %21 = vector.multi_reduction <add>, %20, %cst_18 [0] : vector<256x128xf32> to vector<128xf32>
    %22 = vector.shape_cast %21 : vector<128xf32> to vector<1x128xf32>
    %23 = arith.addf %19, %22 : vector<1x128xf32>
    %c0_19 = arith.constant 0 : index
    %c0_20 = arith.constant 0 : index
    %c0_21 = arith.constant 0 : index
    %24 = vector.load %arg6[%c0_19, %c0_20, %c0_21] : memref<1x1x128xf32, #tpu.memory_space<vmem>>, vector<1x1x128xf32>
    %25 = vector.shape_cast %24 : vector<1x1x128xf32> to vector<1x128xf32>
    %26 = vector.shape_cast %23 : vector<1x128xf32> to vector<1x1x128xf32>
    tpu.vector_store %arg6[%c0_19, %c0_20, %c0_21], %26 {strides = array<i32>} : memref<1x1x128xf32, #tpu.memory_space<vmem>>, vector<1x1x128xf32>,
    return
  }
  func.func @transform_0(%arg0: i32, %arg1: i32) -> (i32, i32, i32) {
    %c0_i32 = arith.constant 0 : i32
    %c0_i32_0 = arith.constant 0 : i32
    return %arg0, %arg1, %c0_i32 : i32, i32, i32
  }
  func.func @transform_1(%arg0: i32, %arg1: i32) -> (i32, i32) {
    %c0_i32 = arith.constant 0 : i32
    %c0_i32_0 = arith.constant 0 : i32
    %c0_i32_1 = arith.constant 0 : i32
    return %c0_i32, %c0_i32_0 : i32, i32
  }
  func.func @transform_2(%arg0: i32, %arg1: i32) -> (i32, i32, i32) {
    %c0_i32 = arith.constant 0 : i32
    %c0_i32_0 = arith.constant 0 : i32
    return %arg0, %arg1, %c0_i32 : i32, i32, i32
  }
  func.func @transform_3(%arg0: i32, %arg1: i32) -> (i32, i32, i32) {
    %c0_i32 = arith.constant 0 : i32
    %c0_i32_0 = arith.constant 0 : i32
    %c0_i32_1 = arith.constant 0 : i32
    return %arg0, %c0_i32, %c0_i32_0 : i32, i32, i32
  }
  func.func @transform_4(%arg0: i32, %arg1: i32) -> (i32, i32, i32) {
    %c0_i32 = arith.constant 0 : i32
    %c0_i32_0 = arith.constant 0 : i32
    %c0_i32_1 = arith.constant 0 : i32
    return %arg0, %c0_i32, %c0_i32_0 : i32, i32, i32
  }
}

</mosaic_0001>

<llo_original>
// kernel: tpu_custom_call.1
$region0: #{tpu_custom_call.1}
  #allocation0 [shape = 'u32[]', space=smem, size = 0x4, offset = 0x4, fixed_abs, tag = 'smem constant byte address 0x4 - core index']
  #allocation1 [shape = 'u32[144,128]{1,0:T(1,128)}', space=vmem, size = 0x12000, scoped, tag = 'internal scratch']
  %s0 = inlined_call_operand.hbm [shape: f32[2,256,128], index: 0, kind: input, shape index: {}]
  %s1 = inlined_call_operand.hbm [shape: f32[128,128], index: 1, kind: input, shape index: {}]
  %s2 = inlined_call_operand.hbm [shape: f32[2,256,128], index: 2, kind: output, shape index: {0}]
  %s3 = inlined_call_operand.hbm [shape: f32[2,1,128], index: 3, kind: output, shape index: {1}]
  %s4 = inlined_call_operand.hbm [shape: f32[2,1,128], index: 4, kind: output, shape index: {2}]
  %5 = xla_tuple %s2, %s3, %s4
  %s6 = sld [smem:[#allocation0]]
  $region69: #{tpu_custom_call.1} parent=0
    _
  %s8 = ssub.s32 1, %s6
  %s9 = scalar_select 0, %s8, %s6
  $region1: #{tpu_custom_call.1} parent=0
    #allocation2 [shape = 'u8[262144]{0}', space=vmem, size = 0x40000, scoped, tag = 'input window, operand 0']
    #allocation3 [shape = 's32[2]{0}', space=sflag, size = 0x8, scoped, tag = 'scoped memory for tpu_custom_call.1']
    #allocation4 [shape = 's32[2]{0}', space=sflag, size = 0x8, scoped, tag = 'scoped memory for tpu_custom_call.1']
    #allocation5 [shape = 'u8[65536]{0}', space=vmem, size = 0x10000, scoped, tag = 'input window, operand 1, single buffered']
    #allocation6 [shape = 's32[1]{0}', space=sflag, size = 0x4, scoped, tag = 'scoped memory for tpu_custom_call.1']
    #allocation7 [shape = 'u8[262144]{0}', space=vmem, size = 0x40000, scoped, tag = 'output window, operand 0']
    #allocation8 [shape = 'u8[1024]{0}', space=vmem, size = 0x400, scoped, tag = 'output window, operand 1']
    #allocation9 [shape = 's32[2]{0}', space=sflag, size = 0x8, scoped, tag = 'scoped memory for tpu_custom_call.1']
    #allocation10 [shape = 'u8[1024]{0}', space=vmem, size = 0x400, scoped, tag = 'output window, operand 2']
    %10 = vsyncpa [#allocation3], 0
    %s11 = scalar_lea.sflag [#allocation3], 1
    %12 = vsyncpa %s11, 0
    %13 = vsyncpa [#allocation6], 0
    %14 = vsyncpa [#allocation4], 0
    %s15 = scalar_lea.sflag [#allocation4], 1
    %16 = vsyncpa %s15, 0
    %17 = vsyncpa [#allocation9], 0
    %s18 = scalar_lea.sflag [#allocation9], 1
    %19 = vsyncpa %s18, 0
    loop: start=0, step=1, limit=4
    $region2: #{tpu_custom_call.1} parent=1 // loop_pre_header
      _
    $region3: #{tpu_custom_call.1} parent=1 // loop_header
      %s21 = sphi 0, %s25
      %p22 = scmp.ge.s32.totalorder %s21, 4
      %s28 = sphi 0, %s40
      %s29 = sphi 0, %s36
      %s30 = sphi 0, %s28
      %s31 = sphi 0, %s29
      %s32 = sphi 0, %s30
      %s33 = sphi 0, %s31
      %s45 = sphi 0, %s47
      %s48 = sphi 0, %s45
      %s49 = sphi 0, %s48
      %s65 = sphi 0, %s49
      %s69 = sphi 0, %s69
      %s71 = sphi 0, %s69
      %s72 = sphi 0, %s71
      %s86 = sphi 0, %s72
      %s94 = sphi 0, %s96
      %s97 = sphi 0, %s94
      %s98 = sphi 0, %s97
      %s114 = sphi 0, %s98
      %s120 = sphi 0, %s122
      %s123 = sphi 0, %s120
      %s124 = sphi 0, %s123
      %s140 = sphi 0, %s124
      %s146 = sphi 0, %s148
      %s149 = sphi 0, %s146
      %s150 = sphi 0, %s149
      %s166 = sphi 0, %s150
    $region4: #{tpu_custom_call.1} parent=1 // loop_header_branch
      %24 = sbr.rel (%p22) target = $region8
    $region5: #{tpu_custom_call.1} parent=1 // loop_body
      %s26 = ssub.s32 %s21, 1
      %s27 = ssub.s32 %s21, 2
      %s34 = sadd.s32 1, %s29
      %p35 = scmp.ge.s32.totalorder %s34, 1
      %s36 = scalar_select %p35, 0, %s34
      %s37 = sadd.s32 1, %s28
      %s38 = scalar_select %p35, %s37, %s28
      %p39 = scmp.ge.s32.totalorder %s38, 2
      %s40 = scalar_select %p39, 0, %s38
      %s41 = ssub.s32 %s28, %s40
      %s42 = ssub.s32 %s29, %s36
      %s43 = sor.u32 %s41, %s42
      %p44 = scmp.eq.s32.totalorder %s43, 0
      %s46 = sadd.s32 %s45, 1
      %s47 = scalar_select %p44, %s45, %s46
      %p50 = pneg %p44
      %p51 = scmp.eq.s32.totalorder %s21, 1
      %p52 = por %p50, %p51
      %p53 = scmp.ne.s32.totalorder %s45, %s48
      %p54 = scmp.eq.s32.totalorder %s21, 0
      %p55 = por %p53, %p54
      %p56 = scmp.ne.s32.totalorder %s45, %s48
      %p57 = scmp.eq.s32.totalorder %s26, 1
      %p58 = por %p56, %p57
      %p59 = scmp.ne.s32.totalorder %s48, %s49
      %p60 = scmp.eq.s32.totalorder %s26, 0
      %p61 = por %p59, %p60
      %p62 = scmp.ne.s32.totalorder %s48, %s49
      %p63 = scmp.eq.s32.totalorder %s27, 1
      %p64 = por %p62, %p63
      %p66 = scmp.ne.s32.totalorder %s49, %s65
      %p67 = scmp.eq.s32.totalorder %s27, 0
      %p68 = por %p66, %p67
      %s70 = sadd.s32 %s69, 1
      %p73 = scmp.eq.s32.totalorder %s21, 1
      %p74 = scmp.ne.s32.totalorder %s69, %s71
      %p75 = scmp.eq.s32.totalorder %s21, 0
      %p76 = por %p74, %p75
      %p77 = scmp.ne.s32.totalorder %s69, %s71
      %p78 = scmp.eq.s32.totalorder %s26, 1
      %p79 = por %p77, %p78
      %p80 = scmp.ne.s32.totalorder %s71, %s72
      %p81 = scmp.eq.s32.totalorder %s26, 0
      %p82 = por %p80, %p81
      %p83 = scmp.ne.s32.totalorder %s71, %s72
      %p84 = scmp.eq.s32.totalorder %s27, 1
      %p85 = por %p83, %p84
      %p87 = scmp.ne.s32.totalorder %s72, %s86
      %p88 = scmp.eq.s32.totalorder %s27, 0
      %p89 = por %p87, %p88
      %s90 = ssub.s32 %s28, %s40
      %s91 = ssub.s32 %s29, %s36
      %s92 = sor.u32 %s90, %s91
      %p93 = scmp.eq.s32.totalorder %s92, 0
      %s95 = sadd.s32 %s94, 1
      %s96 = scalar_select %p93, %s94, %s95
      %p99 = pneg %p93
      %p100 = scmp.eq.s32.totalorder %s21, 1
      %p101 = por %p99, %p100
      %p102 = scmp.ne.s32.totalorder %s94, %s97
      %p103 = scmp.eq.s32.totalorder %s21, 0
      %p104 = por %p102, %p103
      %p105 = scmp.ne.s32.totalorder %s94, %s97
      %p106 = scmp.eq.s32.totalorder %s26, 1
      %p107 = por %p105, %p106
      %p108 = scmp.ne.s32.totalorder %s97, %s98
      %p109 = scmp.eq.s32.totalorder %s26, 0
      %p110 = por %p108, %p109
      %p111 = scmp.ne.s32.totalorder %s97, %s98
      %p112 = scmp.eq.s32.totalorder %s27, 1
      %p113 = por %p111, %p112
      %p115 = scmp.ne.s32.totalorder %s98, %s114
      %p116 = scmp.eq.s32.totalorder %s27, 0
      %p117 = por %p115, %p116
      %s118 = ssub.s32 %s28, %s40
      %p119 = scmp.eq.s32.totalorder %s118, 0
      %s121 = sadd.s32 %s120, 1
      %s122 = scalar_select %p119, %s120, %s121
      %p125 = pneg %p119
      %p126 = scmp.eq.s32.totalorder %s21, 1
      %p127 = por %p125, %p126
      %p128 = scmp.ne.s32.totalorder %s120, %s123
      %p129 = scmp.eq.s32.totalorder %s21, 0
      %p130 = por %p128, %p129
      %p131 = scmp.ne.s32.totalorder %s120, %s123
      %p132 = scmp.eq.s32.totalorder %s26, 1
      %p133 = por %p131, %p132
      %p134 = scmp.ne.s32.totalorder %s123, %s124
      %p135 = scmp.eq.s32.totalorder %s26, 0
      %p136 = por %p134, %p135
      %p137 = scmp.ne.s32.totalorder %s123, %s124
      %p138 = scmp.eq.s32.totalorder %s27, 1
      %p139 = por %p137, %p138
      %p141 = scmp.ne.s32.totalorder %s124, %s140
      %p142 = scmp.eq.s32.totalorder %s27, 0
      %p143 = por %p141, %p142
      %s144 = ssub.s32 %s28, %s40
      %p145 = scmp.eq.s32.totalorder %s144, 0
      %s147 = sadd.s32 %s146, 1
      %s148 = scalar_select %p145, %s146, %s147
      %p151 = pneg %p145
      %p152 = scmp.eq.s32.totalorder %s21, 1
      %p153 = por %p151, %p152
      %p154 = scmp.ne.s32.totalorder %s146, %s149
      %p155 = scmp.eq.s32.totalorder %s21, 0
      %p156 = por %p154, %p155
      %p157 = scmp.ne.s32.totalorder %s146, %s149
      %p158 = scmp.eq.s32.totalorder %s26, 1
      %p159 = por %p157, %p158
      %p160 = scmp.ne.s32.totalorder %s149, %s150
      %p161 = scmp.eq.s32.totalorder %s26, 0
      %p162 = por %p160, %p161
      %p163 = scmp.ne.s32.totalorder %s149, %s150
      %p164 = scmp.eq.s32.totalorder %s27, 1
      %p165 = por %p163, %p164
      %p167 = scmp.ne.s32.totalorder %s150, %s166
      %p168 = scmp.eq.s32.totalorder %s27, 0
      %p169 = por %p167, %p168
      %p170 = scmp.le.s32.totalorder 1, %s21
      %p171 = scmp.lt.s32.totalorder %s21, 3
      %p172 = pnand %p170, %p171
      %p173 = pneg %p172
      // Predicated region
      $region9: #{tpu_custom_call.1} parent=5 // pred_check
        _
      $region10: #{tpu_custom_call.1} parent=5 // pred_check_branch
        %175 = sbr.rel (%p172) target = $region12
      $region11: #{tpu_custom_call.1} parent=5 // pred_region
        %s176 = ssub.s32 %s21, 1
        // Predicated region
        $region13: #{tpu_custom_call.1} parent=11 // pred_check
          %p177 = pneg %p82
        $region14: #{tpu_custom_call.1} parent=11 // pred_check_branch
          %179 = sbr.rel (%p177) target = $region16
        $region15: #{tpu_custom_call.1} parent=11 // pred_region
          %s181 = ssub.s32 2048, 2048
          %182 = vsyncadd [#allocation6], %s181
          %s183 = sshll.u32 [#allocation5], 4
          %s184 = int_to_ptr.vmem [resolvable:$true] %s183
          %189 = dma.hbm_to_vmem [thread:$0]  %s1, 2048, %s184, [#allocation6], 128, 128, 8
        $region16: #{tpu_custom_call.1} parent=11 // pred_fallthru
          _
      $region12: #{tpu_custom_call.1} parent=5 // pred_fallthru
        _
      %p190 = scmp.lt.s32.totalorder %s21, 2
      // Predicated region
      $region17: #{tpu_custom_call.1} parent=5 // pred_check
        %p191 = pneg %p190
      $region18: #{tpu_custom_call.1} parent=5 // pred_check_branch
        %193 = sbr.rel (%p191) target = $region20
      $region19: #{tpu_custom_call.1} parent=5 // pred_region
        // Predicated region
        $region21: #{tpu_custom_call.1} parent=19 // pred_check
          %p194 = pneg %p55
        $region22: #{tpu_custom_call.1} parent=19 // pred_check_branch
          %196 = sbr.rel (%p194) target = $region24
        $region23: #{tpu_custom_call.1} parent=19 // pred_region
          %s197 = sand.u32 %s45, 1
          %s198 = scalar_lea.sflag [#allocation3], %s197
          %s199 = sand.u32 %s45, 1
          %s200 = smul.addr %s199, 256
          %s201 = scalar_lea.vmem [#allocation2], %s200
          %s202 = smul.u32 32, %s29
          %s204 = ssub.s32 4096, 4096
          %205 = vsyncadd %s198, %s204
          %s206 = smul.addr %s28, 32
          %s207 = sadd.s32 %s202, %s206
          %s208 = smul.addr %s207, 128
          %s209 = scalar_lea.hbm %s0, %s208
          %s210 = sshll.u32 %s201, 4
          %s211 = int_to_ptr.vmem [resolvable:$true] %s210
          %216 = dma.hbm_to_vmem [thread:$0]  %s209, 4096, %s211, %s198, 128, 128, 8
        $region24: #{tpu_custom_call.1} parent=19 // pred_fallthru
          _
      $region20: #{tpu_custom_call.1} parent=5 // pred_fallthru
        _
      %p217 = scmp.le.s32.totalorder 1, %s21
      %p218 = scmp.lt.s32.totalorder %s21, 3
      %p219 = pnand %p217, %p218
      %p220 = pneg %p219
      // Predicated region
      $region25: #{tpu_custom_call.1} parent=5 // pred_check
        _
      $region26: #{tpu_custom_call.1} parent=5 // pred_check_branch
        %222 = sbr.rel (%p219) target = $region28
      $region27: #{tpu_custom_call.1} parent=5 // pred_region
        %s223 = ssub.s32 %s21, 1
        %s224 = sand.u32 %s48, 1
        %s225 = scalar_lea.sflag [#allocation3], %s224
        %s226 = sand.u32 %s48, 1
        %s227 = smul.addr %s226, 256
        %s228 = scalar_lea.vmem [#allocation2], %s227
        // Predicated region
        $region29: #{tpu_custom_call.1} parent=27 // pred_check
          %p229 = pneg %p61
        $region30: #{tpu_custom_call.1} parent=27 // pred_check_branch
          %231 = sbr.rel (%p229) target = $region32
        $region31: #{tpu_custom_call.1} parent=27 // pred_region
          %232 = dma.done %s225, 4096
        $region32: #{tpu_custom_call.1} parent=27 // pred_fallthru
          _
        // Predicated region
        $region33: #{tpu_custom_call.1} parent=27 // pred_check
          %p233 = pneg %p82
        $region34: #{tpu_custom_call.1} parent=27 // pred_check_branch
          %235 = sbr.rel (%p233) target = $region36
        $region35: #{tpu_custom_call.1} parent=27 // pred_region
          %236 = dma.done [#allocation6], 2048
        $region36: #{tpu_custom_call.1} parent=27 // pred_fallthru
          _
        %s237 = sand.u32 %s48, 1
        %s238 = scalar_lea.sflag [#allocation3], %s237
        %s239 = sand.u32 %s48, 1
        %s240 = smul.addr %s239, 256
        %s241 = scalar_lea.vmem [#allocation2], %s240
        %p242 = pneg %p61
        %p243 = pneg %p58
        %p244 = pneg %p82
        %p245 = pneg %p79
        %p246 = pneg %p110
        %p247 = pneg %p107
        %s248 = sand.u32 %s97, 1
        %s249 = scalar_lea.sflag [#allocation4], %s248
        %s250 = sand.u32 %s97, 1
        %s251 = smul.addr %s250, 256
        %s252 = scalar_lea.vmem [#allocation7], %s251
        %p253 = pneg %p136
        %p254 = pneg %p133
        %s255 = sand.u32 %s26, 1
        %s256 = scalar_lea.sflag [#allocation9], %s255
        %s257 = sand.u32 %s123, 1
        %s258 = scalar_lea.vmem [#allocation8], %s257
        %p259 = pneg %p162
        %p260 = pneg %p159
        %s261 = sand.u32 %s26, 1
        %s262 = scalar_lea.sflag [#allocation9], %s261
        %s263 = sand.u32 %s149, 1
        %s264 = scalar_lea.vmem [#allocation10], %s263
        %s265 = smul.u32 32, %s31
        %s266 = smul.u32 32, %s31
        %v267 = vld [vmem:[%s228] sm:$0xff]
        %v268 = vld [vmem:[%s228 + $0x8] sm:$0xff]
        %v269 = vld [vmem:[%s228 + $0x10] sm:$0xff]
        %v270 = vld [vmem:[%s228 + $0x18] sm:$0xff]
        %v271 = vld [vmem:[%s228 + $0x20] sm:$0xff]
        %v272 = vld [vmem:[%s228 + $0x28] sm:$0xff]
        %v273 = vld [vmem:[%s228 + $0x30] sm:$0xff]
        %v274 = vld [vmem:[%s228 + $0x38] sm:$0xff]
        %v275 = vld [vmem:[%s228 + $0x40] sm:$0xff]
        %v276 = vld [vmem:[%s228 + $0x48] sm:$0xff]
        %v277 = vld [vmem:[%s228 + $0x50] sm:$0xff]
        %v278 = vld [vmem:[%s228 + $0x58] sm:$0xff]
        %v279 = vld [vmem:[%s228 + $0x60] sm:$0xff]
        %v280 = vld [vmem:[%s228 + $0x68] sm:$0xff]
        %v281 = vld [vmem:[%s228 + $0x70] sm:$0xff]
        %v282 = vld [vmem:[%s228 + $0x78] sm:$0xff]
        %v283 = vld [vmem:[%s228 + $0x80] sm:$0xff]
        %v284 = vld [vmem:[%s228 + $0x88] sm:$0xff]
        %v285 = vld [vmem:[%s228 + $0x90] sm:$0xff]
        %v286 = vld [vmem:[%s228 + $0x98] sm:$0xff]
        %v287 = vld [vmem:[%s228 + $0xa0] sm:$0xff]
        %v288 = vld [vmem:[%s228 + $0xa8] sm:$0xff]
        %v289 = vld [vmem:[%s228 + $0xb0] sm:$0xff]
        %v290 = vld [vmem:[%s228 + $0xb8] sm:$0xff]
        %v291 = vld [vmem:[%s228 + $0xc0] sm:$0xff]
        %v292 = vld [vmem:[%s228 + $0xc8] sm:$0xff]
        %v293 = vld [vmem:[%s228 + $0xd0] sm:$0xff]
        %v294 = vld [vmem:[%s228 + $0xd8] sm:$0xff]
        %v295 = vld [vmem:[%s228 + $0xe0] sm:$0xff]
        %v296 = vld [vmem:[%s228 + $0xe8] sm:$0xff]
        %v297 = vld [vmem:[%s228 + $0xf0] sm:$0xff]
        %v298 = vld [vmem:[%s228 + $0xf8] sm:$0xff]
        %v299 = vld [vmem:[#allocation5] sm:$0xff]
        %v300 = vld [vmem:[#allocation5 + $0x8] sm:$0xff]
        %v301 = vld [vmem:[#allocation5 + $0x10] sm:$0xff]
        %v302 = vld [vmem:[#allocation5 + $0x18] sm:$0xff]
        %v303 = vld [vmem:[#allocation5 + $0x20] sm:$0xff]
        %v304 = vld [vmem:[#allocation5 + $0x28] sm:$0xff]
        %v305 = vld [vmem:[#allocation5 + $0x30] sm:$0xff]
        %v306 = vld [vmem:[#allocation5 + $0x38] sm:$0xff]
        %v307 = vld [vmem:[#allocation5 + $0x40] sm:$0xff]
        %v308 = vld [vmem:[#allocation5 + $0x48] sm:$0xff]
        %v309 = vld [vmem:[#allocation5 + $0x50] sm:$0xff]
        %v310 = vld [vmem:[#allocation5 + $0x58] sm:$0xff]
        %v311 = vld [vmem:[#allocation5 + $0x60] sm:$0xff]
        %v312 = vld [vmem:[#allocation5 + $0x68] sm:$0xff]
        %v313 = vld [vmem:[#allocation5 + $0x70] sm:$0xff]
        %v314 = vld [vmem:[#allocation5 + $0x78] sm:$0xff]
        %315 = vmatprep.subr.mxu0 0.0
        %316 = vmatpush1.msra.mxu0 %v299
        %317 = vmatprep.subr.mxu0 0.0
        %318 = vmatpush1.msra.mxu0 %v300
        %319 = vmatprep.subr.mxu0 0.0
        %320 = vmatpush1.msra.mxu0 %v301
        %321 = vmatprep.subr.mxu0 0.0
        %322 = vmatpush1.msra.mxu0 %v302
        %323 = vmatprep.subr.mxu0 0.0
        %324 = vmatpush1.msra.mxu0 %v303
        %325 = vmatprep.subr.mxu0 0.0
        %326 = vmatpush1.msra.mxu0 %v304
        %327 = vmatprep.subr.mxu0 0.0
        %328 = vmatpush1.msra.mxu0 %v305
        %329 = vmatprep.subr.mxu0 0.0
        %330 = vmatpush1.msra.mxu0 %v306
        %331 = vmatprep.subr.mxu0 0.0
        %332 = vmatpush1.msra.mxu0 %v307
        %333 = vmatprep.subr.mxu0 0.0
        %334 = vmatpush1.msra.mxu0 %v308
        %335 = vmatprep.subr.mxu0 0.0
        %336 = vmatpush1.msra.mxu0 %v309
        %337 = vmatprep.subr.mxu0 0.0
        %338 = vmatpush1.msra.mxu0 %v310
        %339 = vmatprep.subr.mxu0 0.0
        %340 = vmatpush1.msra.mxu0 %v311
        %341 = vmatprep.subr.mxu0 0.0
        %342 = vmatpush1.msra.mxu0 %v312
        %343 = vmatprep.subr.mxu0 0.0
        %344 = vmatpush1.msra.mxu0 %v313
        %345 = vmatprep.subr.mxu0 0.0
        %346 = vmatpush1.msra.mxu0 %v314
        %347 = vmatprep.subr.mxu0 0.0
        %348 = vmatpush1.msra.mxu0 0.0
        %349 = vmatprep.subr.mxu0 0.0
        %350 = vmatpush1.msra.mxu0 0.0
        %351 = vmatprep.subr.mxu0 0.0
        %352 = vmatpush1.msra.mxu0 0.0
        %353 = vmatprep.subr.mxu0 0.0
        %354 = vmatpush1.msra.mxu0 0.0
        %355 = vmatprep.subr.mxu0 0.0
        %356 = vmatpush1.msra.mxu0 0.0
        %357 = vmatprep.subr.mxu0 0.0
        %358 = vmatpush1.msra.mxu0 0.0
        %359 = vmatprep.subr.mxu0 0.0
        %360 = vmatpush1.msra.mxu0 0.0
        %361 = vmatprep.subr.mxu0 0.0
        %362 = vmatpush1.msra.mxu0 0.0
        %363 = vmatprep.subr.mxu0 0.0
        %364 = vmatpush1.msra.mxu0 0.0
        %365 = vmatprep.subr.mxu0 0.0
        %366 = vmatpush1.msra.mxu0 0.0
        %367 = vmatprep.subr.mxu0 0.0
        %368 = vmatpush1.msra.mxu0 0.0
        %369 = vmatprep.subr.mxu0 0.0
        %370 = vmatpush1.msra.mxu0 0.0
        %371 = vmatprep.subr.mxu0 0.0
        %372 = vmatpush1.msra.mxu0 0.0
        %373 = vmatprep.subr.mxu0 0.0
        %374 = vmatpush1.msra.mxu0 0.0
        %375 = vmatprep.subr.mxu0 0.0
        %376 = vmatpush1.msra.mxu0 0.0
        %377 = vmatprep.subr.mxu0 0.0
        %378 = vmatpush1.msra.mxu0 0.0
        %379 = vmatprep.mubr.f32.mxu0 0.0
        %380 = vmatmul.mubr.f32.gmra.mrb[0].mxu0 %v267
        %v381 = vpop.f32.mrb[0].mxu0
        %v382 = vadd.f32 0.0, %v381
        %v383 = vpop.f32.mrb[0].mxu0
        %384 = vmatprep.mubr.f32.mxu0 0.0
        %385 = vmatmul.mubr.f32.gmra.mrb[0].mxu0 %v268
        %v386 = vpop.f32.mrb[0].mxu0
        %v387 = vadd.f32 0.0, %v386
        %v388 = vpop.f32.mrb[0].mxu0
        %389 = vmatprep.mubr.f32.mxu0 0.0
        %390 = vmatmul.mubr.f32.gmra.mrb[0].mxu0 %v269
        %v391 = vpop.f32.mrb[0].mxu0
        %v392 = vadd.f32 0.0, %v391
        %v393 = vpop.f32.mrb[0].mxu0
        %394 = vmatprep.mubr.f32.mxu0 0.0
        %395 = vmatmul.mubr.f32.gmra.mrb[0].mxu0 %v270
        %v396 = vpop.f32.mrb[0].mxu0
        %v397 = vadd.f32 0.0, %v396
        %v398 = vpop.f32.mrb[0].mxu0
        %399 = vmatprep.mubr.f32.mxu0 0.0
        %400 = vmatmul.mubr.f32.gmra.mrb[0].mxu0 %v271
        %v401 = vpop.f32.mrb[0].mxu0
        %v402 = vadd.f32 0.0, %v401
        %v403 = vpop.f32.mrb[0].mxu0
        %404 = vmatprep.mubr.f32.mxu0 0.0
        %405 = vmatmul.mubr.f32.gmra.mrb[0].mxu0 %v272
        %v406 = vpop.f32.mrb[0].mxu0
        %v407 = vadd.f32 0.0, %v406
        %v408 = vpop.f32.mrb[0].mxu0
        %409 = vmatprep.mubr.f32.mxu0 0.0
        %410 = vmatmul.mubr.f32.gmra.mrb[0].mxu0 %v273
        %v411 = vpop.f32.mrb[0].mxu0
        %v412 = vadd.f32 0.0, %v411
        %v413 = vpop.f32.mrb[0].mxu0
        %414 = vmatprep.mubr.f32.mxu0 0.0
        %415 = vmatmul.mubr.f32.gmra.mrb[0].mxu0 %v274
        %v416 = vpop.f32.mrb[0].mxu0
        %v417 = vadd.f32 0.0, %v416
        %v418 = vpop.f32.mrb[0].mxu0
        %419 = vmatprep.mubr.f32.mxu0 0.0
        %420 = vmatmul.mubr.f32.gmra.mrb[0].mxu0 %v275
        %v421 = vpop.f32.mrb[0].mxu0
        %v422 = vadd.f32 0.0, %v421
        %v423 = vpop.f32.mrb[0].mxu0
        %424 = vmatprep.mubr.f32.mxu0 0.0
        %425 = vmatmul.mubr.f32.gmra.mrb[0].mxu0 %v276
        %v426 = vpop.f32.mrb[0].mxu0
        %v427 = vadd.f32 0.0, %v426
        %v428 = vpop.f32.mrb[0].mxu0
        %429 = vmatprep.mubr.f32.mxu0 0.0
        %430 = vmatmul.mubr.f32.gmra.mrb[0].mxu0 %v277
        %v431 = vpop.f32.mrb[0].mxu0
        %v432 = vadd.f32 0.0, %v431
        %v433 = vpop.f32.mrb[0].mxu0
        %434 = vmatprep.mubr.f32.mxu0 0.0
        %435 = vmatmul.mubr.f32.gmra.mrb[0].mxu0 %v278
        %v436 = vpop.f32.mrb[0].mxu0
        %v437 = vadd.f32 0.0, %v436
        %v438 = vpop.f32.mrb[0].mxu0
        %439 = vmatprep.mubr.f32.mxu0 0.0
        %440 = vmatmul.mubr.f32.gmra.mrb[0].mxu0 %v279
        %v441 = vpop.f32.mrb[0].mxu0
        %v442 = vadd.f32 0.0, %v441
        %v443 = vpop.f32.mrb[0].mxu0
        %444 = vmatprep.mubr.f32.mxu0 0.0
        %445 = vmatmul.mubr.f32.gmra.mrb[0].mxu0 %v280
        %v446 = vpop.f32.mrb[0].mxu0
        %v447 = vadd.f32 0.0, %v446
        %v448 = vpop.f32.mrb[0].mxu0
        %449 = vmatprep.mubr.f32.mxu0 0.0
        %450 = vmatmul.mubr.f32.gmra.mrb[0].mxu0 %v281
        %v451 = vpop.f32.mrb[0].mxu0
        %v452 = vadd.f32 0.0, %v451
        %v453 = vpop.f32.mrb[0].mxu0
        %454 = vmatprep.mubr.f32.mxu0 0.0
        %455 = vmatmul.mubr.f32.gmra.mrb[0].mxu0 %v282
        %v456 = vpop.f32.mrb[0].mxu0
        %v457 = vadd.f32 0.0, %v456
        %v458 = vpop.f32.mrb[0].mxu0
        %459 = vmatprep.mubr.f32.mxu0 0.0
        %460 = vmatmul.mubr.f32.gmra.mrb[0].mxu0 %v283
        %v461 = vpop.f32.mrb[0].mxu0
        %v462 = vadd.f32 0.0, %v461
        %v463 = vpop.f32.mrb[0].mxu0
        %464 = vmatprep.mubr.f32.mxu0 0.0
        %465 = vmatmul.mubr.f32.gmra.mrb[0].mxu0 %v284
        %v466 = vpop.f32.mrb[0].mxu0
        %v467 = vadd.f32 0.0, %v466
        %v468 = vpop.f32.mrb[0].mxu0
        %469 = vmatprep.mubr.f32.mxu0 0.0
        %470 = vmatmul.mubr.f32.gmra.mrb[0].mxu0 %v285
        %v471 = vpop.f32.mrb[0].mxu0
        %v472 = vadd.f32 0.0, %v471
        %v473 = vpop.f32.mrb[0].mxu0
        %474 = vmatprep.mubr.f32.mxu0 0.0
        %475 = vmatmul.mubr.f32.gmra.mrb[0].mxu0 %v286
        %v476 = vpop.f32.mrb[0].mxu0
        %v477 = vadd.f32 0.0, %v476
        %v478 = vpop.f32.mrb[0].mxu0
        %479 = vmatprep.mubr.f32.mxu0 0.0
        %480 = vmatmul.mubr.f32.gmra.mrb[0].mxu0 %v287
        %v481 = vpop.f32.mrb[0].mxu0
        %v482 = vadd.f32 0.0, %v481
        %v483 = vpop.f32.mrb[0].mxu0
        %484 = vmatprep.mubr.f32.mxu0 0.0
        %485 = vmatmul.mubr.f32.gmra.mrb[0].mxu0 %v288
        %v486 = vpop.f32.mrb[0].mxu0
        %v487 = vadd.f32 0.0, %v486
        %v488 = vpop.f32.mrb[0].mxu0
        %489 = vmatprep.mubr.f32.mxu0 0.0
        %490 = vmatmul.mubr.f32.gmra.mrb[0].mxu0 %v289
        %v491 = vpop.f32.mrb[0].mxu0
        %v492 = vadd.f32 0.0, %v491
        %v493 = vpop.f32.mrb[0].mxu0
        %494 = vmatprep.mubr.f32.mxu0 0.0
        %495 = vmatmul.mubr.f32.gmra.mrb[0].mxu0 %v290
        %v496 = vpop.f32.mrb[0].mxu0
        %v497 = vadd.f32 0.0, %v496
        %v498 = vpop.f32.mrb[0].mxu0
        %499 = vmatprep.mubr.f32.mxu0 0.0
        %500 = vmatmul.mubr.f32.gmra.mrb[0].mxu0 %v291
        %v501 = vpop.f32.mrb[0].mxu0
        %v502 = vadd.f32 0.0, %v501
        %v503 = vpop.f32.mrb[0].mxu0
        %504 = vmatprep.mubr.f32.mxu0 0.0
        %505 = vmatmul.mubr.f32.gmra.mrb[0].mxu0 %v292
        %v506 = vpop.f32.mrb[0].mxu0
        %v507 = vadd.f32 0.0, %v506
        %v508 = vpop.f32.mrb[0].mxu0
        %509 = vmatprep.mubr.f32.mxu0 0.0
        %510 = vmatmul.mubr.f32.gmra.mrb[0].mxu0 %v293
        %v511 = vpop.f32.mrb[0].mxu0
        %v512 = vadd.f32 0.0, %v511
        %v513 = vpop.f32.mrb[0].mxu0
        %514 = vmatprep.mubr.f32.mxu0 0.0
        %515 = vmatmul.mubr.f32.gmra.mrb[0].mxu0 %v294
        %v516 = vpop.f32.mrb[0].mxu0
        %v517 = vadd.f32 0.0, %v516
        %v518 = vpop.f32.mrb[0].mxu0
        %519 = vmatprep.mubr.f32.mxu0 0.0
        %520 = vmatmul.mubr.f32.gmra.mrb[0].mxu0 %v295
        %v521 = vpop.f32.mrb[0].mxu0
        %v522 = vadd.f32 0.0, %v521
        %v523 = vpop.f32.mrb[0].mxu0
        %524 = vmatprep.mubr.f32.mxu0 0.0
        %525 = vmatmul.mubr.f32.gmra.mrb[0].mxu0 %v296
        %v526 = vpop.f32.mrb[0].mxu0
        %v527 = vadd.f32 0.0, %v526
        %v528 = vpop.f32.mrb[0].mxu0
        %529 = vmatprep.mubr.f32.mxu0 0.0
        %530 = vmatmul.mubr.f32.gmra.mrb[0].mxu0 %v297
        %v531 = vpop.f32.mrb[0].mxu0
        %v532 = vadd.f32 0.0, %v531
        %v533 = vpop.f32.mrb[0].mxu0
        %534 = vmatprep.mubr.f32.mxu0 0.0
        %535 = vmatmul.mubr.f32.gmra.mrb[0].mxu0 %v298
        %v536 = vpop.f32.mrb[0].mxu0
        %v537 = vadd.f32 0.0, %v536
        %v538 = vpop.f32.mrb[0].mxu0
        %539 = vdwg.mxu0
        %540 = vst [vmem:[%s252] sm:$0xff] %v382
        %541 = vst [vmem:[%s252 + $0x8] sm:$0xff] %v387
        %542 = vst [vmem:[%s252 + $0x10] sm:$0xff] %v392
        %543 = vst [vmem:[%s252 + $0x18] sm:$0xff] %v397
        %544 = vst [vmem:[%s252 + $0x20] sm:$0xff] %v402
        %545 = vst [vmem:[%s252 + $0x28] sm:$0xff] %v407
        %546 = vst [vmem:[%s252 + $0x30] sm:$0xff] %v412
        %547 = vst [vmem:[%s252 + $0x38] sm:$0xff] %v417
        %548 = vst [vmem:[%s252 + $0x40] sm:$0xff] %v422
        %549 = vst [vmem:[%s252 + $0x48] sm:$0xff] %v427
        %550 = vst [vmem:[%s252 + $0x50] sm:$0xff] %v432
        %551 = vst [vmem:[%s252 + $0x58] sm:$0xff] %v437
        %552 = vst [vmem:[%s252 + $0x60] sm:$0xff] %v442
        %553 = vst [vmem:[%s252 + $0x68] sm:$0xff] %v447
        %554 = vst [vmem:[%s252 + $0x70] sm:$0xff] %v452
        %555 = vst [vmem:[%s252 + $0x78] sm:$0xff] %v457
        %556 = vst [vmem:[%s252 + $0x80] sm:$0xff] %v462
        %557 = vst [vmem:[%s252 + $0x88] sm:$0xff] %v467
        %558 = vst [vmem:[%s252 + $0x90] sm:$0xff] %v472
        %559 = vst [vmem:[%s252 + $0x98] sm:$0xff] %v477
        %560 = vst [vmem:[%s252 + $0xa0] sm:$0xff] %v482
        %561 = vst [vmem:[%s252 + $0xa8] sm:$0xff] %v487
        %562 = vst [vmem:[%s252 + $0xb0] sm:$0xff] %v492
        %563 = vst [vmem:[%s252 + $0xb8] sm:$0xff] %v497
        %564 = vst [vmem:[%s252 + $0xc0] sm:$0xff] %v502
        %565 = vst [vmem:[%s252 + $0xc8] sm:$0xff] %v507
        %566 = vst [vmem:[%s252 + $0xd0] sm:$0xff] %v512
        %567 = vst [vmem:[%s252 + $0xd8] sm:$0xff] %v517
        %568 = vst [vmem:[%s252 + $0xe0] sm:$0xff] %v522
        %569 = vst [vmem:[%s252 + $0xe8] sm:$0xff] %v527
        %570 = vst [vmem:[%s252 + $0xf0] sm:$0xff] %v532
        %571 = vst [vmem:[%s252 + $0xf8] sm:$0xff] %v537
        %p572 = scmp.eq.s32.totalorder %s31, 0
        // Predicated region
        $region37: #{tpu_custom_call.1} parent=27 // pred_check
          %p573 = pneg %p572
        $region38: #{tpu_custom_call.1} parent=27 // pred_check_branch
          %575 = sbr.rel (%p573) target = $region40
        $region39: #{tpu_custom_call.1} parent=27 // pred_region
          %576 = vst [vmem:[%s258] sm:$0x1] 0.0
          %577 = vst [vmem:[%s264] sm:$0x1] 0.0
        $region40: #{tpu_custom_call.1} parent=27 // pred_fallthru
          _
        %v578 = vld [vmem:[%s258] sm:$0x1]
        %v579 = vadd.f32 %v382, %v387
        %v580 = vadd.f32 %v579, %v392
        %v581 = vadd.f32 %v580, %v397
        %v582 = vadd.f32 %v581, %v402
        %v583 = vadd.f32 %v582, %v407
        %v584 = vadd.f32 %v583, %v412
        %v585 = vadd.f32 %v584, %v417
        %v586 = vadd.f32 %v585, %v422
        %v587 = vadd.f32 %v586, %v427
        %v588 = vadd.f32 %v587, %v432
        %v589 = vadd.f32 %v588, %v437
        %v590 = vadd.f32 %v589, %v442
        %v591 = vadd.f32 %v590, %v447
        %v592 = vadd.f32 %v591, %v452
        %v593 = vadd.f32 %v592, %v457
        %v594 = vadd.f32 %v593, %v462
        %v595 = vadd.f32 %v594, %v467
        %v596 = vadd.f32 %v595, %v472
        %v597 = vadd.f32 %v596, %v477
        %v598 = vadd.f32 %v597, %v482
        %v599 = vadd.f32 %v598, %v487
        %v600 = vadd.f32 %v599, %v492
        %v601 = vadd.f32 %v600, %v497
        %v602 = vadd.f32 %v601, %v502
        %v603 = vadd.f32 %v602, %v507
        %v604 = vadd.f32 %v603, %v512
        %v605 = vadd.f32 %v604, %v517
        %v606 = vadd.f32 %v605, %v522
        %v607 = vadd.f32 %v606, %v527
        %v608 = vadd.f32 %v607, %v532
        %v609 = vadd.f32 %v608, %v537
        %v610 = vrot.slane %v609, 4
        %v611 = vadd.f32 %v609, %v610
        %v612 = vrot.slane %v611, 2
        %v613 = vadd.f32 %v611, %v612
        %v614 = vrot.slane %v613, 1
        %v615 = vadd.f32 %v613, %v614
        %v616 = vadd.f32 %v578, %v615
        %617 = vst [vmem:[%s258] sm:$0x1] %v616
        %v618 = vld [vmem:[%s264] sm:$0x1]
        %v619 = vmul.f32 %v382, %v382
        %v620 = vmul.f32 %v387, %v387
        %v621 = vmul.f32 %v392, %v392
        %v622 = vmul.f32 %v397, %v397
        %v623 = vmul.f32 %v402, %v402
        %v624 = vmul.f32 %v407, %v407
        %v625 = vmul.f32 %v412, %v412
        %v626 = vmul.f32 %v417, %v417
        %v627 = vmul.f32 %v422, %v422
        %v628 = vmul.f32 %v427, %v427
        %v629 = vmul.f32 %v432, %v432
        %v630 = vmul.f32 %v437, %v437
        %v631 = vmul.f32 %v442, %v442
        %v632 = vmul.f32 %v447, %v447
        %v633 = vmul.f32 %v452, %v452
        %v634 = vmul.f32 %v457, %v457
        %v635 = vmul.f32 %v462, %v462
        %v636 = vmul.f32 %v467, %v467
        %v637 = vmul.f32 %v472, %v472
        %v638 = vmul.f32 %v477, %v477
        %v639 = vmul.f32 %v482, %v482
        %v640 = vmul.f32 %v487, %v487
        %v641 = vmul.f32 %v492, %v492
        %v642 = vmul.f32 %v497, %v497
        %v643 = vmul.f32 %v502, %v502
        %v644 = vmul.f32 %v507, %v507
        %v645 = vmul.f32 %v512, %v512
        %v646 = vmul.f32 %v517, %v517
        %v647 = vmul.f32 %v522, %v522
        %v648 = vmul.f32 %v527, %v527
        %v649 = vmul.f32 %v532, %v532
        %v650 = vmul.f32 %v537, %v537
        %v651 = vadd.f32 %v619, %v620
        %v652 = vadd.f32 %v651, %v621
        %v653 = vadd.f32 %v652, %v622
        %v654 = vadd.f32 %v653, %v623
        %v655 = vadd.f32 %v654, %v624
        %v656 = vadd.f32 %v655, %v625
        %v657 = vadd.f32 %v656, %v626
        %v658 = vadd.f32 %v657, %v627
        %v659 = vadd.f32 %v658, %v628
        %v660 = vadd.f32 %v659, %v629
        %v661 = vadd.f32 %v660, %v630
        %v662 = vadd.f32 %v661, %v631
        %v663 = vadd.f32 %v662, %v632
        %v664 = vadd.f32 %v663, %v633
        %v665 = vadd.f32 %v664, %v634
        %v666 = vadd.f32 %v665, %v635
        %v667 = vadd.f32 %v666, %v636
        %v668 = vadd.f32 %v667, %v637
        %v669 = vadd.f32 %v668, %v638
        %v670 = vadd.f32 %v669, %v639
        %v671 = vadd.f32 %v670, %v640
        %v672 = vadd.f32 %v671, %v641
        %v673 = vadd.f32 %v672, %v642
        %v674 = vadd.f32 %v673, %v643
        %v675 = vadd.f32 %v674, %v644
        %v676 = vadd.f32 %v675, %v645
        %v677 = vadd.f32 %v676, %v646
        %v678 = vadd.f32 %v677, %v647
        %v679 = vadd.f32 %v678, %v648
        %v680 = vadd.f32 %v679, %v649
        %v681 = vadd.f32 %v680, %v650
        %v682 = vrot.slane %v681, 4
        %v683 = vadd.f32 %v681, %v682
        %v684 = vrot.slane %v683, 2
        %v685 = vadd.f32 %v683, %v684
        %v686 = vrot.slane %v685, 1
        %v687 = vadd.f32 %v685, %v686
        %v688 = vadd.f32 %v618, %v687
        %689 = vst [vmem:[%s264] sm:$0x1] %v688
        %s690 = sand.u32 %s97, 1
        %s691 = scalar_lea.sflag [#allocation4], %s690
        %s692 = sand.u32 %s97, 1
        %s693 = smul.addr %s692, 256
        %s694 = scalar_lea.vmem [#allocation7], %s693
        %s695 = sand.u32 %s26, 1
        %s696 = scalar_lea.sflag [#allocation9], %s695
        %s697 = sand.u32 %s123, 1
        %s698 = scalar_lea.vmem [#allocation8], %s697
        %s699 = sand.u32 %s26, 1
        %s700 = scalar_lea.sflag [#allocation9], %s699
        %s701 = sand.u32 %s149, 1
        %s702 = scalar_lea.vmem [#allocation10], %s701
        // Predicated region
        $region41: #{tpu_custom_call.1} parent=27 // pred_check
          %p703 = pneg %p107
        $region42: #{tpu_custom_call.1} parent=27 // pred_check_branch
          %705 = sbr.rel (%p703) target = $region44
        $region43: #{tpu_custom_call.1} parent=27 // pred_region
          %s706 = smul.u32 32, %s31
          %s708 = ssub.s32 4096, 4096
          %709 = vsyncadd %s691, %s708
          %s710 = smul.addr %s30, 32
          %s711 = sadd.s32 %s706, %s710
          %s712 = smul.addr %s711, 128
          %s713 = scalar_lea.hbm %s2, %s712
          %s714 = sshll.u32 %s694, 4
          %s715 = int_to_ptr.vmem [resolvable:$true] %s714
          %720 = dma.vmem_to_hbm [thread:$0]  %s715, 4096, %s713, %s691, 128, 128, 8
        $region44: #{tpu_custom_call.1} parent=27 // pred_fallthru
          _
        // Predicated region
        $region45: #{tpu_custom_call.1} parent=27 // pred_check
          %p721 = pneg %p133
        $region46: #{tpu_custom_call.1} parent=27 // pred_check_branch
          %723 = sbr.rel (%p721) target = $region48
        $region47: #{tpu_custom_call.1} parent=27 // pred_region
          %s725 = ssub.s32 16, 16
          %726 = vsyncadd %s696, %s725
          %s727 = smul.addr %s30, 16
          %s728 = scalar_lea.hbm %s3, %s727
          %s730 = sshll.u32 %s698, 4
          %s731 = int_to_ptr.vmem [resolvable:$true] %s730
          %733 = dma.vmem_to_hbm [thread:$0]  %s731, 16, %s728, %s696
        $region48: #{tpu_custom_call.1} parent=27 // pred_fallthru
          _
        // Predicated region
        $region49: #{tpu_custom_call.1} parent=27 // pred_check
          %p734 = pneg %p159
        $region50: #{tpu_custom_call.1} parent=27 // pred_check_branch
          %736 = sbr.rel (%p734) target = $region52
        $region51: #{tpu_custom_call.1} parent=27 // pred_region
          %s738 = ssub.s32 16, 16
          %739 = vsyncadd %s700, %s738
          %s740 = smul.addr %s30, 16
          %s741 = scalar_lea.hbm %s4, %s740
          %s743 = sshll.u32 %s702, 4
          %s744 = int_to_ptr.vmem [resolvable:$true] %s743
          %746 = dma.vmem_to_hbm [thread:$0]  %s744, 16, %s741, %s700
        $region52: #{tpu_custom_call.1} parent=27 // pred_fallthru
          _
      $region28: #{tpu_custom_call.1} parent=5 // pred_fallthru
        _
      %p747 = scmp.le.s32.totalorder 2, %s21
      // Predicated region
      $region53: #{tpu_custom_call.1} parent=5 // pred_check
        %p748 = pneg %p747
      $region54: #{tpu_custom_call.1} parent=5 // pred_check_branch
        %750 = sbr.rel (%p748) target = $region56
      $region55: #{tpu_custom_call.1} parent=5 // pred_region
        %s751 = ssub.s32 %s21, 2
        // Predicated region
        $region57: #{tpu_custom_call.1} parent=55 // pred_check
          %p752 = pneg %p113
        $region58: #{tpu_custom_call.1} parent=55 // pred_check_branch
          %754 = sbr.rel (%p752) target = $region60
        $region59: #{tpu_custom_call.1} parent=55 // pred_region
          %s755 = sand.u32 %s98, 1
          %s756 = scalar_lea.sflag [#allocation4], %s755
          %s757 = sand.u32 %s98, 1
          %s758 = smul.addr %s757, 256
          %s759 = scalar_lea.vmem [#allocation7], %s758
          %760 = dma.done %s756, 4096
        $region60: #{tpu_custom_call.1} parent=55 // pred_fallthru
          _
        // Predicated region
        $region61: #{tpu_custom_call.1} parent=55 // pred_check
          %p761 = pneg %p139
        $region62: #{tpu_custom_call.1} parent=55 // pred_check_branch
          %763 = sbr.rel (%p761) target = $region64
        $region63: #{tpu_custom_call.1} parent=55 // pred_region
          %s764 = sand.u32 %s27, 1
          %s765 = scalar_lea.sflag [#allocation9], %s764
          %s766 = sand.u32 %s124, 1
          %s767 = scalar_lea.vmem [#allocation8], %s766
          %768 = dma.done %s765, 16
        $region64: #{tpu_custom_call.1} parent=55 // pred_fallthru
          _
        // Predicated region
        $region65: #{tpu_custom_call.1} parent=55 // pred_check
          %p769 = pneg %p165
        $region66: #{tpu_custom_call.1} parent=55 // pred_check_branch
          %771 = sbr.rel (%p769) target = $region68
        $region67: #{tpu_custom_call.1} parent=55 // pred_region
          %s772 = sand.u32 %s27, 1
          %s773 = scalar_lea.sflag [#allocation9], %s772
          %s774 = sand.u32 %s150, 1
          %s775 = scalar_lea.vmem [#allocation10], %s774
          %776 = dma.done %s773, 16
        $region68: #{tpu_custom_call.1} parent=55 // pred_fallthru
          _
      $region56: #{tpu_custom_call.1} parent=5 // pred_fallthru
        _
    $region6: #{tpu_custom_call.1} parent=1 // loop_footer
      %s25 = sadd.s32 1, %s21
    $region7: #{tpu_custom_call.1} parent=1 // loop_footer_branch
      %20 = sbr.rel target = $region3
    $region8: #{tpu_custom_call.1} parent=1 // loop_exit
      _
    %777 = vsyncpa [#allocation3], 1
    %s778 = scalar_lea.sflag [#allocation3], 1
    %779 = vsyncpa %s778, 1
    %780 = vsyncpa [#allocation6], 1
    %781 = vsyncpa [#allocation4], 1
    %s782 = scalar_lea.sflag [#allocation4], 1
    %783 = vsyncpa %s782, 1
    %784 = vsyncpa [#allocation9], 1
    %s785 = scalar_lea.sflag [#allocation9], 1
    %786 = vsyncpa %s785, 1

</llo_original>
